<compile_context>
chip_gen: v7x
topology: tpu7x:2x2x1
jax: 0.10.0
libtpu: 0.0.40
codegen_flags: <defaults>
</compile_context>

<pallas_src>
import functools

import jax
import jax.numpy as jnp
from jax import lax
from jax.experimental import pallas as pl
from jax.experimental.pallas import tpu as pltpu


def _round_up(x, m):
    return (x + m - 1) // m * m


def _label_smoothing_kernel(pred_ref, target_ref, out_ref, *, smoothing, classes):
    # pred_ref:   (C, TB)   logits; class axis on sublanes, batch on lanes.
    # target_ref: (1, TB)   int32 class indices for this batch tile.
    # out_ref:    (1, 1, TB) float32 per-sample losses for this batch tile.
    pred = pred_ref[...].astype(jnp.float32)                    # (C, TB)
    tgt = target_ref[...]                                       # (1, TB)
    c, tb = pred.shape

    confidence = 1.0 - smoothing
    off_value = smoothing / (classes - 1)

    # Numerically stable log-sum-exp over the class (sublane) axis.
    col_max = jnp.max(pred, axis=0, keepdims=True)              # (1, TB)
    shifted = pred - col_max                                    # (C, TB)
    lse = jnp.log(jnp.sum(jnp.exp(shifted), axis=0, keepdims=True))  # (1, TB)

    # loss_b = sum_c -true_dist[c,b] * (shifted[c,b] - lse[b])
    #        = lse[b] * sum_c(true_dist)
    #          - off*sum_c(shifted[:,b]) - (conf-off)*shifted[tgt_b, b]
    # sum_c(true_dist) = confidence + (C-1)*off == 1.  No true_dist / logp
    # (C, TB) temporaries are materialized.
    row_ids = lax.broadcasted_iota(jnp.int32, (c, tb), 0)       # class id per sublane
    one_hot = row_ids == tgt                                    # (C, TB) via broadcast
    shifted_tgt = jnp.sum(jnp.where(one_hot, shifted, 0.0),
                          axis=0, keepdims=True)                # (1, TB)
    sum_shifted = jnp.sum(shifted, axis=0, keepdims=True)       # (1, TB)

    true_sum = confidence + (classes - 1) * off_value           # == 1.0
    per_sample = (true_sum * lse
                  - off_value * sum_shifted
                  - (confidence - off_value) * shifted_tgt)     # (1, TB)

    out_ref[...] = per_sample.reshape(out_ref.shape)


def label_smoothing_loss(pred, target, *, classes, smoothing=0.1, block_b=512):
    """Pallas-TPU LabelSmoothingLoss forward. Returns a scalar float32 loss.

    pred: (B, C) float logits, target: (B,) int class indices.
    """
    b, c = pred.shape
    assert c == classes

    # Batch tile: multiple of 128 lanes, no bigger than the (padded) batch.
    tb = min(int(block_b), _round_up(b, 128))
    tb = max(128, (tb // 128) * 128)
    b_pad = _round_up(b, tb)
    num_tiles = b_pad // tb

    # Layout plumbing in the wrapper: (B, C) -> (C, B_pad), lane-dense batch.
    pred_t = jnp.pad(jnp.transpose(pred), ((0, 0), (0, b_pad - b)))      # (C, B_pad)
    tgt_row = jnp.pad(target.astype(jnp.int32), (0, b_pad - b)).reshape(1, b_pad)

    kernel = functools.partial(
        _label_smoothing_kernel, smoothing=float(smoothing), classes=int(classes)
    )

    per_sample = pl.pallas_call(
        kernel,
        out_shape=jax.ShapeDtypeStruct((num_tiles, 1, tb), jnp.float32),
        grid=(num_tiles,),
        in_specs=[
            pl.BlockSpec((c, tb), lambda i: (0, i)),   # logits tile (C, TB)
            pl.BlockSpec((1, tb), lambda i: (0, i)),   # targets tile (1, TB)
        ],
        out_specs=pl.BlockSpec((1, 1, tb), lambda i: (i, 0, 0)),
        compiler_params=pltpu.CompilerParams(
            dimension_semantics=("parallel",),         # megacore-shardable on v7x
        ),
    )(pred_t, tgt_row)

    # Wrapper-side finalize: drop padded rows, mean over the real batch.
    per_sample = per_sample.reshape(b_pad)[:b]
    return jnp.sum(per_sample) / jnp.float32(b)


def _reference_loss(pred, target, *, classes, smoothing=0.1):
    confidence = 1.0 - smoothing
    logp = jax.nn.log_softmax(pred.astype(jnp.float32), axis=-1)
    true_dist = jnp.full_like(logp, smoothing / (classes - 1))
    true_dist = true_dist.at[jnp.arange(pred.shape[0]), target].set(confidence)
    return jnp.mean(jnp.sum(-true_dist * logp, axis=-1))


if __name__ == "__main__":
    SMOOTHING = 0.1

    # Case 1: small deterministic example, batch=8 logits over 31 classes
    # (Office-31), exercises batch padding (8 -> 128 lanes).
    B, CLASSES = 8, 31
    key = jax.random.PRNGKey(0)
    k_pred, k_tgt = jax.random.split(key)
    pred = jax.random.normal(k_pred, (B, CLASSES), dtype=jnp.float32)
    target = jax.random.randint(k_tgt, (B,), 0, CLASSES, dtype=jnp.int32)

    loss = jax.block_until_ready(
        label_smoothing_loss(pred, target, classes=CLASSES, smoothing=SMOOTHING)
    )
    ref = jax.block_until_ready(
        _reference_loss(pred, target, classes=CLASSES, smoothing=SMOOTHING)
    )
    assert jnp.allclose(loss, ref, rtol=1e-5, atol=1e-5), (loss, ref)

    # Case 2: multi-tile grid + ragged batch (B=200 with TB=128 -> 2 tiles,
    # 56 padded columns) to exercise the grid and the padding mask.
    B2 = 200
    k_pred2, k_tgt2 = jax.random.split(jax.random.PRNGKey(1))
    pred2 = jax.random.normal(k_pred2, (B2, CLASSES), dtype=jnp.float32)
    target2 = jax.random.randint(k_tgt2, (B2,), 0, CLASSES, dtype=jnp.int32)

    loss2 = jax.block_until_ready(
        label_smoothing_loss(pred2, target2, classes=CLASSES,
                             smoothing=SMOOTHING, block_b=128)
    )
    ref2 = jax.block_until_ready(
        _reference_loss(pred2, target2, classes=CLASSES, smoothing=SMOOTHING)
    )
    assert jnp.allclose(loss2, ref2, rtol=1e-5, atol=1e-5), (loss2, ref2)

    print("KERNEL_OK")
</pallas_src>

<mosaic_0001>
module attributes {stable_mosaic.version = 11 : i64} {
  func.func @_label_smoothing_kernel(%arg0: i32, %arg1: memref<31x128xf32, #tpu.memory_space<vmem>>, %arg2: memref<1x128xi32, #tpu.memory_space<vmem>>, %arg3: memref<1x1x128xf32, #tpu.memory_space<vmem>>) attributes {dimension_semantics = [#tpu.dimension_semantics<parallel>], iteration_bounds = array<i64: 1>, scalar_prefetch = 0 : i64, scratch_operands = 0 : i64, tpu.core_type = #tpu.core_type<tc>, window_params = [{transform_indices = @transform_0, window_bounds = array<i64: 31, 128>}, {transform_indices = @transform_1, window_bounds = array<i64: 1, 128>}, {transform_indices = @transform_2, window_bounds = array<i64: 1, 1, 128>}]} {
    %c0 = arith.constant 0 : index
    %c0_0 = arith.constant 0 : index
    %0 = vector.load %arg1[%c0, %c0_0] : memref<31x128xf32, #tpu.memory_space<vmem>>, vector<31x128xf32>
    %c0_1 = arith.constant 0 : index
    %c0_2 = arith.constant 0 : index
    %1 = vector.load %arg2[%c0_1, %c0_2] : memref<1x128xi32, #tpu.memory_space<vmem>>, vector<1x128xi32>
    %cst = arith.constant dense<0xFF800000> : vector<128xf32>
    %2 = vector.multi_reduction <maximumf>, %0, %cst [0] : vector<31x128xf32> to vector<128xf32>
    %3 = vector.shape_cast %2 : vector<128xf32> to vector<1x128xf32>
    %4 = vector.broadcast %3 : vector<1x128xf32> to vector<31x128xf32>
    %5 = arith.subf %0, %4 : vector<31x128xf32>
    %6 = math.exp %5 : vector<31x128xf32>
    %cst_3 = arith.constant dense<0.000000e+00> : vector<128xf32>
    %7 = vector.multi_reduction <add>, %6, %cst_3 [0] : vector<31x128xf32> to vector<128xf32>
    %8 = vector.shape_cast %7 : vector<128xf32> to vector<1x128xf32>
    %9 = math.log %8 : vector<1x128xf32>
    %10 = tpu.iota {dimensions = array<i32: 0>} : vector<31x128xi32>
    %11 = vector.broadcast %1 : vector<1x128xi32> to vector<31x128xi32>
    %12 = arith.cmpi eq, %10, %11 : vector<31x128xi32>
    %cst_4 = arith.constant 0.000000e+00 : f32
    %13 = vector.broadcast %cst_4 : f32 to vector<31x128xf32>
    %14 = arith.select %12, %5, %13 : vector<31x128xi1>, vector<31x128xf32>
    %cst_5 = arith.constant dense<0.000000e+00> : vector<128xf32>
    %15 = vector.multi_reduction <add>, %14, %cst_5 [0] : vector<31x128xf32> to vector<128xf32>
    %16 = vector.shape_cast %15 : vector<128xf32> to vector<1x128xf32>
    %cst_6 = arith.constant dense<0.000000e+00> : vector<128xf32>
    %17 = vector.multi_reduction <add>, %5, %cst_6 [0] : vector<31x128xf32> to vector<128xf32>
    %18 = vector.shape_cast %17 : vector<128xf32> to vector<1x128xf32>
    %cst_7 = arith.constant 1.000000e+00 : f32
    %19 = vector.broadcast %cst_7 : f32 to vector<1x128xf32>
    %20 = arith.mulf %19, %9 : vector<1x128xf32>
    %cst_8 = arith.constant 0.00333333341 : f32
    %21 = vector.broadcast %cst_8 : f32 to vector<1x128xf32>
    %22 = arith.mulf %21, %18 : vector<1x128xf32>
    %23 = arith.subf %20, %22 : vector<1x128xf32>
    %cst_9 = arith.constant 0.896666646 : f32
    %24 = vector.broadcast %cst_9 : f32 to vector<1x128xf32>
    %25 = arith.mulf %24, %16 : vector<1x128xf32>
    %26 = arith.subf %23, %25 : vector<1x128xf32>
    %27 = vector.shape_cast %26 : vector<1x128xf32> to vector<1x1x128xf32>
    %c0_10 = arith.constant 0 : index
    %c0_11 = arith.constant 0 : index
    %c0_12 = arith.constant 0 : index
    %28 = vector.load %arg3[%c0_10, %c0_11, %c0_12] : memref<1x1x128xf32, #tpu.memory_space<vmem>>, vector<1x1x128xf32>
    tpu.vector_store %arg3[%c0_10, %c0_11, %c0_12], %27 {strides = array<i32>} : memref<1x1x128xf32, #tpu.memory_space<vmem>>, vector<1x1x128xf32>,
    return
  }
  func.func @transform_0(%arg0: i32) -> (i32, i32) {
    %c0_i32 = arith.constant 0 : i32
    %c0_i32_0 = arith.constant 0 : i32
    return %c0_i32, %arg0 : i32, i32
  }
  func.func @transform_1(%arg0: i32) -> (i32, i32) {
    %c0_i32 = arith.constant 0 : i32
    %c0_i32_0 = arith.constant 0 : i32
    return %c0_i32, %arg0 : i32, i32
  }
  func.func @transform_2(%arg0: i32) -> (i32, i32, i32) {
    %c0_i32 = arith.constant 0 : i32
    %c0_i32_0 = arith.constant 0 : i32
    %c0_i32_1 = arith.constant 0 : i32
    return %arg0, %c0_i32, %c0_i32_0 : i32, i32, i32
  }
}

</mosaic_0001>

<llo_original>
// kernel: tpu_custom_call.1
$region0: #{tpu_custom_call.1}
  #allocation0 [shape = 'u32[]', space=smem, size = 0x4, offset = 0x4, fixed_abs, tag = 'smem constant byte address 0x4 - core index']
  #allocation1 [shape = 'u32[144,128]{1,0:T(1,128)}', space=vmem, size = 0x12000, scoped, tag = 'internal scratch']
  %s0 = inlined_call_operand.hbm [shape: f32[31,128], index: 0, kind: input, shape index: {}]
  %s1 = inlined_call_operand.vmem [shape: s32[1,128], index: 1, kind: input, shape index: {}]
  %s2 = inlined_call_operand.hbm [shape: f32[1,1,128], index: 2, kind: output, shape index: {}]
  %s3 = sld [smem:[#allocation0]]
  $region22: #{tpu_custom_call.1} parent=0
    _
  %s5 = ssub.s32 1, %s3
  %s6 = scalar_select 0, %s5, %s3
  $region1: #{tpu_custom_call.1} parent=0
    #allocation2 [shape = 'u8[16384]{0}', space=vmem, size = 0x4000, scoped, tag = 'input window, operand 0, single buffered']
    #allocation3 [shape = 's32[1]{0}', space=sflag, size = 0x4, scoped, tag = 'scoped memory for tpu_custom_call.1']
    #allocation4 [shape = 's32[1]{0}', space=sflag, size = 0x4, scoped, tag = 'scoped memory for tpu_custom_call.1']
    #allocation5 [shape = 'u8[512]{0}', space=vmem, size = 0x400, scoped, tag = 'output window, operand 0, single buffered']
    %7 = vsyncpa [#allocation3], 0
    %8 = vsyncpa [#allocation4], 0
    // Predicated region
    $region2: #{tpu_custom_call.1} parent=1 // pred_check
      _
    $region3: #{tpu_custom_call.1} parent=1 // pred_check_branch
      %10 = sbr.rel (0) target = $region5
    $region4: #{tpu_custom_call.1} parent=1 // pred_region
      %s12 = ssub.s32 512, 512
      %13 = vsyncadd [#allocation3], %s12
      %s14 = sshll.u32 [#allocation2], 4
      %s15 = int_to_ptr.vmem [resolvable:$true] %s14
      %20 = dma.hbm_to_vmem [thread:$0]  %s0, 512, %s15, [#allocation3], 128, 128, 8
    $region5: #{tpu_custom_call.1} parent=1 // pred_fallthru
      _
    // Predicated region
    $region6: #{tpu_custom_call.1} parent=1 // pred_check
      _
    $region7: #{tpu_custom_call.1} parent=1 // pred_check_branch
      %22 = sbr.rel (0) target = $region9
    $region8: #{tpu_custom_call.1} parent=1 // pred_region
      _
    $region9: #{tpu_custom_call.1} parent=1 // pred_fallthru
      _
    // Predicated region
    $region10: #{tpu_custom_call.1} parent=1 // pred_check
      _
    $region11: #{tpu_custom_call.1} parent=1 // pred_check_branch
      %24 = sbr.rel (0) target = $region13
    $region12: #{tpu_custom_call.1} parent=1 // pred_region
      %25 = dma.done [#allocation3], 512
    $region13: #{tpu_custom_call.1} parent=1 // pred_fallthru
      _
    %v26 = vld [vmem:[#allocation2] sm:$0xff]
    %v27 = vld [vmem:[#allocation2 + $0x8] sm:$0xff]
    %v28 = vld [vmem:[#allocation2 + $0x10] sm:$0xff]
    %v29 = vld [vmem:[#allocation2 + $0x18] sm:$0x7f]
    %v30 = vld [vmem:[%s1] sm:$0x1]
    %vm31 = vcmask 1046528
    %v32 = vsel %vm31, %v29, -inf
    %v33 = vmax.f32 %v26, %v27
    %v34 = vmax.f32 %v28, %v32
    %v35 = vmax.f32 %v33, %v34
    %v36 = vrot.slane %v35, 4
    %v37 = vmax.f32 %v35, %v36
    %v38 = vrot.slane %v37, 2
    %v39 = vmax.f32 %v37, %v38
    %v40 = vrot.slane %v39, 1
    %v41 = vmax.f32 %v39, %v40
    %v42 = vsub.f32 %v26, %v41
    %v43 = vsub.f32 %v27, %v41
    %v44 = vsub.f32 %v28, %v41
    %v45 = vsub.f32 %v29, %v41
    %v46 = vmul.f32 %v42, 1.442695
    %v47 = vpow.pop %v46
    %v48 = vmul.f32 %v43, 1.442695
    %v49 = vpow.pop %v48
    %v50 = vmul.f32 %v44, 1.442695
    %v51 = vpow.pop %v50
    %v52 = vmul.f32 %v45, 1.442695
    %v53 = vpow.pop %v52
    %v54 = vadd.f32 %v47, %v49
    %v55 = vadd.f32 %v54, %v51
    %v56 = vsel %vm31, %v53, 0.0
    %v57 = vadd.f32 %v55, %v56
    %v58 = vrot.slane %v57, 4
    %v59 = vadd.f32 %v57, %v58
    %v60 = vrot.slane %v59, 2
    %v61 = vadd.f32 %v59, %v60
    %v62 = vrot.slane %v61, 1
    %v63 = vadd.f32 %v61, %v62
    %v64 = vlog2.pop %v63
    %v65 = vmul.f32 %v64, 0.6931472
    %v66 = vlaneseq
    %v67 = vshrl.u32 %v66, 7
    %v68 = vadd.s32 %v67, 8
    %v69 = vadd.s32 %v67, 16
    %v70 = vadd.s32 %v67, 24
    %v71 = vlaneseq
    %v72 = vshrl.u32 %v71, 7
    %v73 = vsub.s32 0, %v72
    %v74 = vrot.slane %v30, %v73
    %vm75 = vcmp.eq.s32.totalorder %v67, %v74
    %vm76 = vcmp.eq.s32.totalorder %v68, %v74
    %vm77 = vcmp.eq.s32.totalorder %v69, %v74
    %vm78 = vcmp.eq.s32.totalorder %v70, %v74
    %v79 = vsel %vm75, %v42, 0.0
    %v80 = vsel %vm76, %v43, 0.0
    %v81 = vsel %vm77, %v44, 0.0
    %v82 = vsel %vm78, %v45, 0.0
    %v83 = vadd.f32 %v79, %v80
    %v84 = vadd.f32 %v83, %v81
    %v85 = vsel %vm31, %v82, 0.0
    %v86 = vadd.f32 %v84, %v85
    %v87 = vrot.slane %v86, 4
    %v88 = vadd.f32 %v86, %v87
    %v89 = vrot.slane %v88, 2
    %v90 = vadd.f32 %v88, %v89
    %v91 = vrot.slane %v90, 1
    %v92 = vadd.f32 %v90, %v91
    %v93 = vadd.f32 %v42, %v43
    %v94 = vadd.f32 %v93, %v44
    %v95 = vsel %vm31, %v45, 0.0
    %v96 = vadd.f32 %v94, %v95
    %v97 = vrot.slane %v96, 4
    %v98 = vadd.f32 %v96, %v97
    %v99 = vrot.slane %v98, 2
    %v100 = vadd.f32 %v98, %v99
    %v101 = vrot.slane %v100, 1
    %v102 = vadd.f32 %v100, %v101
    %v103 = vmul.f32 %v102, 0.0033333334
    %v104 = vsub.f32 %v65, %v103
    %v105 = vmul.f32 %v92, 0.89666665
    %v106 = vsub.f32 %v104, %v105
    %107 = vst [vmem:[#allocation5] sm:$0x1] %v106
    // Predicated region
    $region14: #{tpu_custom_call.1} parent=1 // pred_check
      _
    $region15: #{tpu_custom_call.1} parent=1 // pred_check_branch
      %109 = sbr.rel (0) target = $region17
    $region16: #{tpu_custom_call.1} parent=1 // pred_region
      %s111 = ssub.s32 16, 16
      %112 = vsyncadd [#allocation4], %s111
      %s114 = sshll.u32 [#allocation5], 4
      %s115 = int_to_ptr.vmem [resolvable:$true] %s114
      %117 = dma.vmem_to_hbm [thread:$0]  %s115, 16, %s2, [#allocation4]
    $region17: #{tpu_custom_call.1} parent=1 // pred_fallthru
      _
    // Predicated region
    $region18: #{tpu_custom_call.1} parent=1 // pred_check
      _
    $region19: #{tpu_custom_call.1} parent=1 // pred_check_branch
      %119 = sbr.rel (0) target = $region21
    $region20: #{tpu_custom_call.1} parent=1 // pred_region
      %120 = dma.done [#allocation4], 16
    $region21: #{tpu_custom_call.1} parent=1 // pred_fallthru
      _
    %121 = vsyncpa [#allocation3], 1
    %122 = vsyncpa [#allocation4], 1

</llo_original>
